<compile_context>
chip_gen: v7x
topology: tpu7x:2x2x1
jax: 0.10.0
libtpu: 0.0.40
codegen_flags: <defaults>
</compile_context>

<pallas_src>
import functools

import jax
import jax.numpy as jnp
from jax.experimental import pallas as pl
from jax.experimental.pallas import tpu as pltpu


def _rgcn_kernel(a_ref, h_ref, b_ref, o_ref, acc_ref, *, compute_dtype):
    # Grid step == (relation r, row tile m, contraction tile k); k innermost.
    # a_ref  : (TM, TK)        stored dtype (f32 by default) -- cast in-kernel
    # h_ref  : (TK, out_ft_p)  compute_dtype -- K-slab of X @ W_r
    # b_ref  : (1, out_ft_p)   f32
    # o_ref  : (TM, out_ft_p)  f32 -- written only on the final k step
    # acc_ref: (TM, out_ft_p)  f32 scratch accumulator (persists across k)
    k = pl.program_id(2)

    @pl.when(k == 0)
    def _init():
        acc_ref[...] = jnp.zeros_like(acc_ref)

    a = a_ref[...].astype(compute_dtype)          # per-tile cast; no extra HBM pass
    acc_ref[...] += jnp.dot(a, h_ref[...], preferred_element_type=jnp.float32)

    @pl.when(k == pl.num_programs(2) - 1)
    def _finalize():
        acc = acc_ref[...] + b_ref[...]                          # broadcast over TM
        o_ref[...] = jnp.maximum(acc, 0.0).astype(o_ref.dtype)   # act == 'relu'


def _round_up(x, m):
    return (x + m - 1) // m * m


def _vmem_capacity_bytes():
    """Per-core VMEM capacity of the chip we are running on."""
    try:
        return int(pltpu.get_tpu_info().vmem_capacity_bytes)
    except Exception:
        return 64 * 1024 * 1024   # conservative default (v7x per-core VMEM)


def _pick_tiles(n_pad, a_itemsize, vmem_cap):
    """(TM, TK) for the adjacency block.  n_pad is a multiple of 128, so both
    tiles always divide it exactly (no whole-row VMEM fallback)."""
    # K tile: largest of {1024, 512, 256, 128} that divides n_pad (lane-aligned).
    tk = next(c for c in (1024, 512, 256, 128) if n_pad % c == 0)
    # The streamed, double-buffered A tile gets ~40% of this chip's VMEM.
    budget_a = (vmem_cap * 40) // 100
    cap_tm = min(1024, n_pad, max(8, budget_a // (2 * tk * a_itemsize)))
    tm, t = 8, 8
    while t <= cap_tm:
        if n_pad % t == 0:
            tm = t
        t += 8
    return tm, tk


def rgcn_forward(seqs, adjs, comp, weight, bias=None,
                 compute_dtype=jnp.bfloat16):
    """seqs: (1, N, in_ft); adjs: (num_rels, N, N) dense (streamed in its own
    dtype -- pass f32 for the default bf16-compute path, or pass a quantized
    adjacency yourself).  Pass compute_dtype=jnp.float32 for a full-precision
    (PyTorch-exact) path at higher MXU cost.

    Returns (num_rels, N, out_ft) f32, or (N, out_ft) when num_rels == 1
    (matching torch.squeeze(torch.stack(out))).
    """
    num_bases, in_ft, out_ft = weight.shape
    num_rels = comp.shape[0]
    x = jnp.squeeze(seqs, axis=0)                       # (N, in_ft)
    N = x.shape[0]

    # TODO(synk): dropout == identity (inference semantics).

    out_ft_p = _round_up(out_ft, 128)                   # lane-dense output columns
    n_pad = _round_up(N, 128)
    if n_pad != N:
        # One extra HBM pass over A only when N is unaligned; aligned N is free.
        adjs = jnp.pad(adjs, ((0, 0), (0, n_pad - N), (0, n_pad - N)))
        x = jnp.pad(x, ((0, n_pad - N), (0, 0)))

    # ---- JAX prologue: basis mixing + hoisted feature transform ----
    w_mixed = jnp.matmul(comp, weight.reshape(num_bases, -1)).reshape(
        num_rels, in_ft, out_ft)
    if out_ft_p != out_ft:
        w_mixed = jnp.pad(w_mixed, ((0, 0), (0, 0), (0, out_ft_p - out_ft)))
    # One wide matmul instead of recomputing X @ W_r per relation / tile.
    h = jnp.einsum('nf,rfo->rno', x, w_mixed).astype(compute_dtype)  # (R, n_pad, out_ft_p)

    if bias is None:
        bias = jnp.zeros((out_ft,), jnp.float32)        # isBias=False path
    bias_p = jnp.zeros((1, out_ft_p), jnp.float32).at[0, :out_ft].set(
        bias.astype(jnp.float32))

    # ---- Generation-aware tiling / VMEM budget ----
    a_itemsize = jnp.dtype(adjs.dtype).itemsize
    h_itemsize = jnp.dtype(h.dtype).itemsize
    vmem_cap = _vmem_capacity_bytes()
    tm, tk = _pick_tiles(n_pad, a_itemsize, vmem_cap)
    n_m, n_k = n_pad // tm, n_pad // tk

    vmem_need = (2 * tm * tk * a_itemsize              # A tile, double-buffered
                 + 2 * tk * out_ft_p * h_itemsize      # H K-slab, double-buffered
                 + 2 * out_ft_p * 4                    # bias (tiny)
                 + 2 * tm * out_ft_p * 4               # output tile, double-buffered
                 + tm * out_ft_p * 4                   # f32 accumulator scratch
                 + (2 << 20))                          # compiler scratch headroom
    vmem_limit = int(min(max(vmem_need, 32 * 1024 * 1024), (vmem_cap * 85) // 100))

    cost = pl.CostEstimate(
        flops=2 * num_rels * n_pad * n_pad * out_ft_p,
        transcendentals=0,
        bytes_accessed=int(num_rels * n_pad * n_pad * a_itemsize            # A once
                           + num_rels * n_m * n_pad * out_ft_p * h_itemsize  # H per row tile
                           + num_rels * n_pad * out_ft_p * 4))               # output

    kernel = functools.partial(_rgcn_kernel, compute_dtype=compute_dtype)

    out = pl.pallas_call(
        kernel,
        out_shape=jax.ShapeDtypeStruct((num_rels, n_pad, out_ft_p), jnp.float32),
        grid_spec=pltpu.PrefetchScalarGridSpec(
            num_scalar_prefetch=0,
            grid=(num_rels, n_m, n_k),
            in_specs=[
                pl.BlockSpec((None, tm, tk), lambda r, m, k: (r, m, k)),        # A (stored dtype)
                pl.BlockSpec((None, tk, out_ft_p), lambda r, m, k: (r, k, 0)),  # H_r K-slab
                pl.BlockSpec((1, out_ft_p), lambda r, m, k: (0, 0)),            # bias
            ],
            out_specs=pl.BlockSpec((None, tm, out_ft_p), lambda r, m, k: (r, m, 0)),
            scratch_shapes=[pltpu.VMEM((tm, out_ft_p), jnp.float32)],
        ),
        compiler_params=pltpu.CompilerParams(
            dimension_semantics=("parallel", "parallel", "arbitrary"),
            vmem_limit_bytes=vmem_limit),
        cost_estimate=cost,
    )(adjs, h, bias_p)

    out = out[:, :N, :out_ft]                      # drop row / lane padding
    if num_rels == 1:                              # torch.squeeze(torch.stack(out))
        out = out[0]
    return out


def _glorot(key, shape):
    fan_in, fan_out = shape[-2], shape[-1]
    stdv = jnp.sqrt(6.0 / (fan_in + fan_out))
    return jax.random.uniform(key, shape, jnp.float32, -stdv, stdv)


if __name__ == "__main__":
    # Small, TPU-friendly shapes (kernel scales to large N via (row, K) tiling).
    num_rels, num_bases = 2, 2
    N, in_ft, out_ft = 128, 64, 32

    key = jax.random.PRNGKey(0)
    k_comp, k_w, k_seq, k_adj = jax.random.split(key, 4)

    comp = _glorot(k_comp, (num_rels, num_bases))
    weight = _glorot(k_w, (num_bases, in_ft, out_ft))
    bias = jnp.zeros((out_ft,), jnp.float32)          # isBias=True -> zeros init

    seqs = jax.random.normal(k_seq, (1, N, in_ft), jnp.float32)
    adjs = jax.random.uniform(k_adj, (num_rels, N, N), jnp.float32)

    out = jax.block_until_ready(rgcn_forward(seqs, adjs, comp, weight, bias))

    # Pure-JAX reference with matching compute precision (bf16 operands,
    # f32 accumulation) for a tight tolerance check.  Use
    # compute_dtype=jnp.float32 in rgcn_forward for a PyTorch-exact f32 path.
    x = jnp.squeeze(seqs, axis=0)
    w_mixed = jnp.matmul(comp, weight.reshape(num_bases, -1)).reshape(
        num_rels, in_ft, out_ft)
    h_ref = jnp.einsum('nf,rfo->rno', x, w_mixed)
    h_ref = h_ref.astype(jnp.bfloat16).astype(jnp.float32)
    a_ref = adjs.astype(jnp.bfloat16).astype(jnp.float32)
    ref = jnp.einsum('rij,rjo->rio', a_ref, h_ref) + bias[None, None, :]
    ref = jnp.maximum(ref, 0.0)

    assert out.shape == (num_rels, N, out_ft), out.shape
    max_err = float(jnp.max(jnp.abs(out - ref)))
    assert jnp.allclose(out, ref, atol=2e-3, rtol=2e-3), max_err

    print("KERNEL_OK")
</pallas_src>

<mosaic_0001>
module attributes {stable_mosaic.version = 11 : i64} {
  func.func @_rgcn_kernel(%arg0: i32, %arg1: i32, %arg2: i32, %arg3: memref<1x128x128xf32, #tpu.memory_space<vmem>>, %arg4: memref<1x128x128xbf16, #tpu.memory_space<vmem>>, %arg5: memref<1x128xf32, #tpu.memory_space<vmem>>, %arg6: memref<1x128x128xf32, #tpu.memory_space<vmem>>, %arg7: memref<128x128xf32, #tpu.memory_space<vmem>>) attributes {dimension_semantics = [#tpu.dimension_semantics<parallel>, #tpu.dimension_semantics<parallel>, #tpu.dimension_semantics<arbitrary>], iteration_bounds = array<i64: 2, 1, 1>, scalar_prefetch = 0 : i64, scratch_operands = 1 : i64, tpu.core_type = #tpu.core_type<tc>, window_params = [{transform_indices = @transform_0, window_bounds = array<i64: 1, 128, 128>}, {transform_indices = @transform_1, window_bounds = array<i64: 1, 128, 128>}, {pipeline_mode = #tpu.pipeline_mode<synchronous>, transform_indices = @transform_2, window_bounds = array<i64: 1, 128>}, {transform_indices = @transform_3, window_bounds = array<i64: 1, 128, 128>}]} {
    %c0_i32 = arith.constant 0 : i32
    %0 = arith.cmpi eq, %arg2, %c0_i32 : i32
    %1 = arith.extui %0 : i1 to i32
    %c0_i32_0 = arith.constant 0 : i32
    %2 = arith.cmpi ne, %1, %c0_i32_0 : i32
    scf.if %2 {
      %cst_12 = arith.constant 0.000000e+00 : f32
      %15 = vector.broadcast %cst_12 : f32 to vector<128x128xf32>
      %c0_13 = arith.constant 0 : index
      %c0_14 = arith.constant 0 : index
      %16 = vector.load %arg7[%c0_13, %c0_14] : memref<128x128xf32, #tpu.memory_space<vmem>>, vector<128x128xf32>
      tpu.vector_store %arg7[%c0_13, %c0_14], %15 {strides = array<i32>} : memref<128x128xf32, #tpu.memory_space<vmem>>, vector<128x128xf32>,
    } else {
    }
    %c0 = arith.constant 0 : index
    %c0_1 = arith.constant 0 : index
    %c0_2 = arith.constant 0 : index
    %3 = vector.load %arg3[%c0, %c0_1, %c0_2] : memref<1x128x128xf32, #tpu.memory_space<vmem>>, vector<1x128x128xf32>
    %4 = vector.shape_cast %3 : vector<1x128x128xf32> to vector<128x128xf32>
    %5 = arith.truncf %4 : vector<128x128xf32> to vector<128x128xbf16>
    %c0_3 = arith.constant 0 : index
    %c0_4 = arith.constant 0 : index
    %6 = vector.load %arg7[%c0_3, %c0_4] : memref<128x128xf32, #tpu.memory_space<vmem>>, vector<128x128xf32>
    %c0_5 = arith.constant 0 : index
    %c0_6 = arith.constant 0 : index
    %c0_7 = arith.constant 0 : index
    %7 = vector.load %arg4[%c0_5, %c0_6, %c0_7] : memref<1x128x128xbf16, #tpu.memory_space<vmem>>, vector<1x128x128xbf16>
    %8 = vector.shape_cast %7 : vector<1x128x128xbf16> to vector<128x128xbf16>
    %cst = arith.constant dense<0.000000e+00> : vector<128x128xf32>
    %9 = tpu.matmul %5, %8, %cst {dimension_numbers = #tpu.dot_dimension_numbers<[1], [0], [0], [1], [0, 0, 1, 1], [], []>} : vector<128x128xbf16>, vector<128x128xbf16>, vector<128x128xf32> -> vector<128x128xf32>
    %10 = arith.addf %6, %9 : vector<128x128xf32>
    %c0_8 = arith.constant 0 : index
    %c0_9 = arith.constant 0 : index
    %11 = vector.load %arg7[%c0_8, %c0_9] : memref<128x128xf32, #tpu.memory_space<vmem>>, vector<128x128xf32>
    tpu.vector_store %arg7[%c0_8, %c0_9], %10 {strides = array<i32>} : memref<128x128xf32, #tpu.memory_space<vmem>>, vector<128x128xf32>,
    %c0_i32_10 = arith.constant 0 : i32
    %12 = arith.cmpi eq, %arg2, %c0_i32_10 : i32
    %13 = arith.extui %12 : i1 to i32
    %c0_i32_11 = arith.constant 0 : i32
    %14 = arith.cmpi ne, %13, %c0_i32_11 : i32
    scf.if %14 {
      %c0_12 = arith.constant 0 : index
      %c0_13 = arith.constant 0 : index
      %15 = vector.load %arg7[%c0_12, %c0_13] : memref<128x128xf32, #tpu.memory_space<vmem>>, vector<128x128xf32>
      %c0_14 = arith.constant 0 : index
      %c0_15 = arith.constant 0 : index
      %16 = vector.load %arg5[%c0_14, %c0_15] : memref<1x128xf32, #tpu.memory_space<vmem>>, vector<1x128xf32>
      %17 = vector.broadcast %16 : vector<1x128xf32> to vector<128x128xf32>
      %18 = arith.addf %15, %17 : vector<128x128xf32>
      %cst_16 = arith.constant 0.000000e+00 : f32
      %19 = vector.broadcast %cst_16 : f32 to vector<128x128xf32>
      %20 = arith.maximumf %18, %19 : vector<128x128xf32>
      %c0_17 = arith.constant 0 : index
      %c0_18 = arith.constant 0 : index
      %c0_19 = arith.constant 0 : index
      %21 = vector.load %arg6[%c0_17, %c0_18, %c0_19] : memref<1x128x128xf32, #tpu.memory_space<vmem>>, vector<1x128x128xf32>
      %22 = vector.shape_cast %21 : vector<1x128x128xf32> to vector<128x128xf32>
      %23 = vector.shape_cast %20 : vector<128x128xf32> to vector<1x128x128xf32>
      tpu.vector_store %arg6[%c0_17, %c0_18, %c0_19], %23 {strides = array<i32>} : memref<1x128x128xf32, #tpu.memory_space<vmem>>, vector<1x128x128xf32>,
    } else {
    }
    return
  }
  func.func @transform_0(%arg0: i32, %arg1: i32, %arg2: i32) -> (i32, i32, i32) {
    %c0_i32 = arith.constant 0 : i32
    return %arg0, %arg1, %arg2 : i32, i32, i32
  }
  func.func @transform_1(%arg0: i32, %arg1: i32, %arg2: i32) -> (i32, i32, i32) {
    %c0_i32 = arith.constant 0 : i32
    %c0_i32_0 = arith.constant 0 : i32
    return %arg0, %arg2, %c0_i32 : i32, i32, i32
  }
  func.func @transform_2(%arg0: i32, %arg1: i32, %arg2: i32) -> (i32, i32) {
    %c0_i32 = arith.constant 0 : i32
    %c0_i32_0 = arith.constant 0 : i32
    %c0_i32_1 = arith.constant 0 : i32
    return %c0_i32, %c0_i32_0 : i32, i32
  }
  func.func @transform_3(%arg0: i32, %arg1: i32, %arg2: i32) -> (i32, i32, i32) {
    %c0_i32 = arith.constant 0 : i32
    %c0_i32_0 = arith.constant 0 : i32
    return %arg0, %arg1, %c0_i32 : i32, i32, i32
  }
}

</mosaic_0001>

<llo_original>
// kernel: tpu_custom_call.1
$region0: #{tpu_custom_call.1}
  #allocation0 [shape = 'u32[]', space=smem, size = 0x4, offset = 0x4, fixed_abs, tag = 'smem constant byte address 0x4 - core index']
  #allocation1 [shape = 'u32[144,128]{1,0:T(1,128)}', space=vmem, size = 0x12000, scoped, tag = 'internal scratch']
  #allocation2 [shape = 'f32[128,128]{1,0:T(8,128)}', space=vmem, size = 0x10000, scoped, tag = 'scratch operand']
  %s0 = inlined_call_operand.hbm [shape: f32[2,128,128], index: 0, kind: input, shape index: {}]
  %s1 = inlined_call_operand.hbm [shape: bf16[2,128,128], index: 1, kind: input, shape index: {}]
  %s2 = inlined_call_operand.vmem [shape: f32[1,128], index: 2, kind: input, shape index: {}]
  %s3 = inlined_call_operand.hbm [shape: f32[2,128,128], index: 3, kind: output, shape index: {}]
  %s4 = sld [smem:[#allocation0]]
  $region61: #{tpu_custom_call.1} parent=0
    _
  %s6 = ssub.s32 1, %s4
  %s7 = scalar_select 0, %s6, %s4
  $region1: #{tpu_custom_call.1} parent=0
    #allocation3 [shape = 'u8[131072]{0}', space=vmem, size = 0x20000, scoped, tag = 'input window, operand 0']
    #allocation4 [shape = 's32[2]{0}', space=sflag, size = 0x8, scoped, tag = 'scoped memory for tpu_custom_call.1']
    #allocation5 [shape = 's32[2]{0}', space=sflag, size = 0x8, scoped, tag = 'scoped memory for tpu_custom_call.1']
    #allocation6 [shape = 'u8[65536]{0}', space=vmem, size = 0x10000, scoped, tag = 'input window, operand 1']
    #allocation7 [shape = 's32[2]{0}', space=sflag, size = 0x8, scoped, tag = 'scoped memory for tpu_custom_call.1']
    #allocation8 [shape = 'u8[131072]{0}', space=vmem, size = 0x20000, scoped, tag = 'output window, operand 0']
    %8 = vsyncpa [#allocation4], 0
    %s9 = scalar_lea.sflag [#allocation4], 1
    %10 = vsyncpa %s9, 0
    %11 = vsyncpa [#allocation7], 0
    %s12 = scalar_lea.sflag [#allocation7], 1
    %13 = vsyncpa %s12, 0
    %14 = vsyncpa [#allocation5], 0
    %s15 = scalar_lea.sflag [#allocation5], 1
    %16 = vsyncpa %s15, 0
    loop: start=0, step=1, limit=4
    $region2: #{tpu_custom_call.1} parent=1 // loop_pre_header
      _
    $region3: #{tpu_custom_call.1} parent=1 // loop_header
      %s18 = sphi 0, %s22
      %p19 = scmp.ge.s32.totalorder %s18, 4
      %s25 = sphi 0, %s44
      %s26 = sphi 0, %s40
      %s27 = sphi 0, %s36
      %s28 = sphi 0, %s25
      %s29 = sphi 0, %s26
      %s30 = sphi 0, %s27
      %s31 = sphi 0, %s28
      %s32 = sphi 0, %s29
      %s33 = sphi 0, %s30
      %s51 = sphi 0, %s53
      %s54 = sphi 0, %s51
      %s55 = sphi 0, %s54
      %s71 = sphi 0, %s55
      %s79 = sphi 0, %s81
      %s82 = sphi 0, %s79
      %s83 = sphi 0, %s82
      %s99 = sphi 0, %s83
      %s103 = sphi 0, %s103
      %s105 = sphi 0, %s103
      %s106 = sphi 0, %s105
      %s120 = sphi 0, %s106
      %s128 = sphi 0, %s130
      %s131 = sphi 0, %s128
      %s132 = sphi 0, %s131
      %s148 = sphi 0, %s132
    $region4: #{tpu_custom_call.1} parent=1 // loop_header_branch
      %21 = sbr.rel (%p19) target = $region8
    $region5: #{tpu_custom_call.1} parent=1 // loop_body
      %s23 = ssub.s32 %s18, 1
      %s24 = ssub.s32 %s18, 2
      %s34 = sadd.s32 1, %s27
      %p35 = scmp.ge.s32.totalorder %s34, 1
      %s36 = scalar_select %p35, 0, %s34
      %s37 = sadd.s32 1, %s26
      %s38 = scalar_select %p35, %s37, %s26
      %p39 = scmp.ge.s32.totalorder %s38, 1
      %s40 = scalar_select %p39, 0, %s38
      %s41 = sadd.s32 1, %s25
      %s42 = scalar_select %p39, %s41, %s25
      %p43 = scmp.ge.s32.totalorder %s42, 2
      %s44 = scalar_select %p43, 0, %s42
      %s45 = ssub.s32 %s25, %s44
      %s46 = ssub.s32 %s26, %s40
      %s47 = sor.u32 %s45, %s46
      %s48 = ssub.s32 %s27, %s36
      %s49 = sor.u32 %s47, %s48
      %p50 = scmp.eq.s32.totalorder %s49, 0
      %s52 = sadd.s32 %s51, 1
      %s53 = scalar_select %p50, %s51, %s52
      %p56 = pneg %p50
      %p57 = scmp.eq.s32.totalorder %s18, 1
      %p58 = por %p56, %p57
      %p59 = scmp.ne.s32.totalorder %s51, %s54
      %p60 = scmp.eq.s32.totalorder %s18, 0
      %p61 = por %p59, %p60
      %p62 = scmp.ne.s32.totalorder %s51, %s54
      %p63 = scmp.eq.s32.totalorder %s23, 1
      %p64 = por %p62, %p63
      %p65 = scmp.ne.s32.totalorder %s54, %s55
      %p66 = scmp.eq.s32.totalorder %s23, 0
      %p67 = por %p65, %p66
      %p68 = scmp.ne.s32.totalorder %s54, %s55
      %p69 = scmp.eq.s32.totalorder %s24, 1
      %p70 = por %p68, %p69
      %p72 = scmp.ne.s32.totalorder %s55, %s71
      %p73 = scmp.eq.s32.totalorder %s24, 0
      %p74 = por %p72, %p73
      %s75 = ssub.s32 %s25, %s44
      %s76 = ssub.s32 %s27, %s36
      %s77 = sor.u32 %s75, %s76
      %p78 = scmp.eq.s32.totalorder %s77, 0
      %s80 = sadd.s32 %s79, 1
      %s81 = scalar_select %p78, %s79, %s80
      %p84 = pneg %p78
      %p85 = scmp.eq.s32.totalorder %s18, 1
      %p86 = por %p84, %p85
      %p87 = scmp.ne.s32.totalorder %s79, %s82
      %p88 = scmp.eq.s32.totalorder %s18, 0
      %p89 = por %p87, %p88
      %p90 = scmp.ne.s32.totalorder %s79, %s82
      %p91 = scmp.eq.s32.totalorder %s23, 1
      %p92 = por %p90, %p91
      %p93 = scmp.ne.s32.totalorder %s82, %s83
      %p94 = scmp.eq.s32.totalorder %s23, 0
      %p95 = por %p93, %p94
      %p96 = scmp.ne.s32.totalorder %s82, %s83
      %p97 = scmp.eq.s32.totalorder %s24, 1
      %p98 = por %p96, %p97
      %p100 = scmp.ne.s32.totalorder %s83, %s99
      %p101 = scmp.eq.s32.totalorder %s24, 0
      %p102 = por %p100, %p101
      %s104 = sadd.s32 %s103, 1
      %p107 = scmp.eq.s32.totalorder %s18, 1
      %p108 = scmp.ne.s32.totalorder %s103, %s105
      %p109 = scmp.eq.s32.totalorder %s18, 0
      %p110 = por %p108, %p109
      %p111 = scmp.ne.s32.totalorder %s103, %s105
      %p112 = scmp.eq.s32.totalorder %s23, 1
      %p113 = por %p111, %p112
      %p114 = scmp.ne.s32.totalorder %s105, %s106
      %p115 = scmp.eq.s32.totalorder %s23, 0
      %p116 = por %p114, %p115
      %p117 = scmp.ne.s32.totalorder %s105, %s106
      %p118 = scmp.eq.s32.totalorder %s24, 1
      %p119 = por %p117, %p118
      %p121 = scmp.ne.s32.totalorder %s106, %s120
      %p122 = scmp.eq.s32.totalorder %s24, 0
      %p123 = por %p121, %p122
      %s124 = ssub.s32 %s25, %s44
      %s125 = ssub.s32 %s26, %s40
      %s126 = sor.u32 %s124, %s125
      %p127 = scmp.eq.s32.totalorder %s126, 0
      %s129 = sadd.s32 %s128, 1
      %s130 = scalar_select %p127, %s128, %s129
      %p133 = pneg %p127
      %p134 = scmp.eq.s32.totalorder %s18, 1
      %p135 = por %p133, %p134
      %p136 = scmp.ne.s32.totalorder %s128, %s131
      %p137 = scmp.eq.s32.totalorder %s18, 0
      %p138 = por %p136, %p137
      %p139 = scmp.ne.s32.totalorder %s128, %s131
      %p140 = scmp.eq.s32.totalorder %s23, 1
      %p141 = por %p139, %p140
      %p142 = scmp.ne.s32.totalorder %s131, %s132
      %p143 = scmp.eq.s32.totalorder %s23, 0
      %p144 = por %p142, %p143
      %p145 = scmp.ne.s32.totalorder %s131, %s132
      %p146 = scmp.eq.s32.totalorder %s24, 1
      %p147 = por %p145, %p146
      %p149 = scmp.ne.s32.totalorder %s132, %s148
      %p150 = scmp.eq.s32.totalorder %s24, 0
      %p151 = por %p149, %p150
      %p152 = scmp.le.s32.totalorder 1, %s18
      %p153 = scmp.lt.s32.totalorder %s18, 3
      %p154 = pnand %p152, %p153
      %p155 = pneg %p154
      // Predicated region
      $region9: #{tpu_custom_call.1} parent=5 // pred_check
        _
      $region10: #{tpu_custom_call.1} parent=5 // pred_check_branch
        %157 = sbr.rel (%p154) target = $region12
      $region11: #{tpu_custom_call.1} parent=5 // pred_region
        %s158 = ssub.s32 %s18, 1
        // Predicated region
        $region13: #{tpu_custom_call.1} parent=11 // pred_check
          %p159 = pneg %p116
        $region14: #{tpu_custom_call.1} parent=11 // pred_check_branch
          %161 = sbr.rel (%p159) target = $region16
        $region15: #{tpu_custom_call.1} parent=11 // pred_region
          _
        $region16: #{tpu_custom_call.1} parent=11 // pred_fallthru
          _
      $region12: #{tpu_custom_call.1} parent=5 // pred_fallthru
        _
      %p162 = scmp.lt.s32.totalorder %s18, 2
      // Predicated region
      $region17: #{tpu_custom_call.1} parent=5 // pred_check
        %p163 = pneg %p162
      $region18: #{tpu_custom_call.1} parent=5 // pred_check_branch
        %165 = sbr.rel (%p163) target = $region20
      $region19: #{tpu_custom_call.1} parent=5 // pred_region
        // Predicated region
        $region21: #{tpu_custom_call.1} parent=19 // pred_check
          %p166 = pneg %p61
        $region22: #{tpu_custom_call.1} parent=19 // pred_check_branch
          %168 = sbr.rel (%p166) target = $region24
        $region23: #{tpu_custom_call.1} parent=19 // pred_region
          %s169 = sand.u32 %s51, 1
          %s170 = scalar_lea.sflag [#allocation4], %s169
          %s171 = sand.u32 %s51, 1
          %s172 = smul.addr %s171, 128
          %s173 = scalar_lea.vmem [#allocation3], %s172
          %s174 = smul.u32 16, %s26
          %s176 = ssub.s32 2048, 2048
          %177 = vsyncadd %s170, %s176
          %s178 = sadd.s32 %s27, %s174
          %s179 = smul.addr %s25, 16
          %s180 = sadd.s32 %s178, %s179
          %s181 = smul.addr %s180, 128
          %s182 = scalar_lea.hbm %s0, %s181
          %s183 = sshll.u32 %s173, 4
          %s184 = int_to_ptr.vmem [resolvable:$true] %s183
          %189 = dma.hbm_to_vmem [thread:$0]  %s182, 2048, %s184, %s170, 128, 128, 8
        $region24: #{tpu_custom_call.1} parent=19 // pred_fallthru
          _
        // Predicated region
        $region25: #{tpu_custom_call.1} parent=19 // pred_check
          %p190 = pneg %p89
        $region26: #{tpu_custom_call.1} parent=19 // pred_check_branch
          %192 = sbr.rel (%p190) target = $region28
        $region27: #{tpu_custom_call.1} parent=19 // pred_region
          %s193 = sand.u32 %s79, 1
          %s194 = scalar_lea.sflag [#allocation7], %s193
          %s195 = sand.u32 %s79, 1
          %s196 = smul.addr %s195, 64
          %s197 = scalar_lea.vmem [#allocation6], %s196
          %s198 = smul.u32 16, %s27
          %s200 = ssub.s32 1024, 1024
          %201 = vsyncadd %s194, %s200
          %s202 = smul.addr %s25, 16
          %s203 = sadd.s32 %s198, %s202
          %s204 = smul.addr %s203, 64
          %s205 = scalar_lea.hbm %s1, %s204
          %s206 = sshll.u32 %s197, 4
          %s207 = int_to_ptr.vmem [resolvable:$true] %s206
          %212 = dma.hbm_to_vmem [thread:$0]  %s205, 1024, %s207, %s194, 64, 64, 4
        $region28: #{tpu_custom_call.1} parent=19 // pred_fallthru
          _
      $region20: #{tpu_custom_call.1} parent=5 // pred_fallthru
        _
      %p213 = scmp.le.s32.totalorder 1, %s18
      %p214 = scmp.lt.s32.totalorder %s18, 3
      %p215 = pnand %p213, %p214
      %p216 = pneg %p215
      // Predicated region
      $region29: #{tpu_custom_call.1} parent=5 // pred_check
        _
      $region30: #{tpu_custom_call.1} parent=5 // pred_check_branch
        %218 = sbr.rel (%p215) target = $region32
      $region31: #{tpu_custom_call.1} parent=5 // pred_region
        %s219 = ssub.s32 %s18, 1
        %s220 = sand.u32 %s54, 1
        %s221 = scalar_lea.sflag [#allocation4], %s220
        %s222 = sand.u32 %s54, 1
        %s223 = smul.addr %s222, 128
        %s224 = scalar_lea.vmem [#allocation3], %s223
        // Predicated region
        $region33: #{tpu_custom_call.1} parent=31 // pred_check
          %p225 = pneg %p67
        $region34: #{tpu_custom_call.1} parent=31 // pred_check_branch
          %227 = sbr.rel (%p225) target = $region36
        $region35: #{tpu_custom_call.1} parent=31 // pred_region
          %228 = dma.done %s221, 2048
        $region36: #{tpu_custom_call.1} parent=31 // pred_fallthru
          _
        %s229 = sand.u32 %s82, 1
        %s230 = scalar_lea.sflag [#allocation7], %s229
        %s231 = sand.u32 %s82, 1
        %s232 = smul.addr %s231, 64
        %s233 = scalar_lea.vmem [#allocation6], %s232
        // Predicated region
        $region37: #{tpu_custom_call.1} parent=31 // pred_check
          %p234 = pneg %p95
        $region38: #{tpu_custom_call.1} parent=31 // pred_check_branch
          %236 = sbr.rel (%p234) target = $region40
        $region39: #{tpu_custom_call.1} parent=31 // pred_region
          %237 = dma.done %s230, 1024
        $region40: #{tpu_custom_call.1} parent=31 // pred_fallthru
          _
        %s238 = sand.u32 %s54, 1
        %s239 = scalar_lea.sflag [#allocation4], %s238
        %s240 = sand.u32 %s54, 1
        %s241 = smul.addr %s240, 128
        %s242 = scalar_lea.vmem [#allocation3], %s241
        %p243 = pneg %p67
        %p244 = pneg %p64
        %s245 = sand.u32 %s82, 1
        %s246 = scalar_lea.sflag [#allocation7], %s245
        %s247 = sand.u32 %s82, 1
        %s248 = smul.addr %s247, 64
        %s249 = scalar_lea.vmem [#allocation6], %s248
        %p250 = pneg %p95
        %p251 = pneg %p92
        %p252 = pneg %p116
        %p253 = pneg %p113
        %p254 = pneg %p144
        %p255 = pneg %p141
        %s256 = sand.u32 %s131, 1
        %s257 = scalar_lea.sflag [#allocation5], %s256
        %s258 = sand.u32 %s131, 1
        %s259 = smul.addr %s258, 128
        %s260 = scalar_lea.vmem [#allocation8], %s259
        %s261 = smul.u32 16, %s29
        %s262 = smul.u32 16, %s30
        %s263 = smul.u32 16, %s29
        %p265 = scmp.eq.s32.totalorder %s30, 0
        // Predicated region
        $region41: #{tpu_custom_call.1} parent=31 // pred_check
          %p266 = pneg %p265
        $region42: #{tpu_custom_call.1} parent=31 // pred_check_branch
          %268 = sbr.rel (%p266) target = $region44
        $region43: #{tpu_custom_call.1} parent=31 // pred_region
          %269 = vst [vmem:[#allocation2] sm:$0xff] 0.0
          %270 = vst [vmem:[#allocation2 + $0x8] sm:$0xff] 0.0
          %271 = vst [vmem:[#allocation2 + $0x10] sm:$0xff] 0.0
          %272 = vst [vmem:[#allocation2 + $0x18] sm:$0xff] 0.0
          %273 = vst [vmem:[#allocation2 + $0x20] sm:$0xff] 0.0
          %274 = vst [vmem:[#allocation2 + $0x28] sm:$0xff] 0.0
          %275 = vst [vmem:[#allocation2 + $0x30] sm:$0xff] 0.0
          %276 = vst [vmem:[#allocation2 + $0x38] sm:$0xff] 0.0
          %277 = vst [vmem:[#allocation2 + $0x40] sm:$0xff] 0.0
          %278 = vst [vmem:[#allocation2 + $0x48] sm:$0xff] 0.0
          %279 = vst [vmem:[#allocation2 + $0x50] sm:$0xff] 0.0
          %280 = vst [vmem:[#allocation2 + $0x58] sm:$0xff] 0.0
          %281 = vst [vmem:[#allocation2 + $0x60] sm:$0xff] 0.0
          %282 = vst [vmem:[#allocation2 + $0x68] sm:$0xff] 0.0
          %283 = vst [vmem:[#allocation2 + $0x70] sm:$0xff] 0.0
          %284 = vst [vmem:[#allocation2 + $0x78] sm:$0xff] 0.0
        $region44: #{tpu_custom_call.1} parent=31 // pred_fallthru
          _
        %v285 = vld [vmem:[%s224] sm:$0xff]
        %v286 = vld [vmem:[%s224 + $0x8] sm:$0xff]
        %v287 = vld [vmem:[%s224 + $0x10] sm:$0xff]
        %v288 = vld [vmem:[%s224 + $0x18] sm:$0xff]
        %v289 = vld [vmem:[%s224 + $0x20] sm:$0xff]
        %v290 = vld [vmem:[%s224 + $0x28] sm:$0xff]
        %v291 = vld [vmem:[%s224 + $0x30] sm:$0xff]
        %v292 = vld [vmem:[%s224 + $0x38] sm:$0xff]
        %v293 = vld [vmem:[%s224 + $0x40] sm:$0xff]
        %v294 = vld [vmem:[%s224 + $0x48] sm:$0xff]
        %v295 = vld [vmem:[%s224 + $0x50] sm:$0xff]
        %v296 = vld [vmem:[%s224 + $0x58] sm:$0xff]
        %v297 = vld [vmem:[%s224 + $0x60] sm:$0xff]
        %v298 = vld [vmem:[%s224 + $0x68] sm:$0xff]
        %v299 = vld [vmem:[%s224 + $0x70] sm:$0xff]
        %v300 = vld [vmem:[%s224 + $0x78] sm:$0xff]
        %v301 = vpack.c.bf16 %v286, %v285
        %v302 = vpack.c.bf16 %v288, %v287
        %v303 = vpack.c.bf16 %v290, %v289
        %v304 = vpack.c.bf16 %v292, %v291
        %v305 = vpack.c.bf16 %v294, %v293
        %v306 = vpack.c.bf16 %v296, %v295
        %v307 = vpack.c.bf16 %v298, %v297
        %v308 = vpack.c.bf16 %v300, %v299
        %v309 = vld [vmem:[#allocation2] sm:$0xff]
        %v310 = vld [vmem:[#allocation2 + $0x8] sm:$0xff]
        %v311 = vld [vmem:[#allocation2 + $0x10] sm:$0xff]
        %v312 = vld [vmem:[#allocation2 + $0x18] sm:$0xff]
        %v313 = vld [vmem:[#allocation2 + $0x20] sm:$0xff]
        %v314 = vld [vmem:[#allocation2 + $0x28] sm:$0xff]
        %v315 = vld [vmem:[#allocation2 + $0x30] sm:$0xff]
        %v316 = vld [vmem:[#allocation2 + $0x38] sm:$0xff]
        %v317 = vld [vmem:[#allocation2 + $0x40] sm:$0xff]
        %v318 = vld [vmem:[#allocation2 + $0x48] sm:$0xff]
        %v319 = vld [vmem:[#allocation2 + $0x50] sm:$0xff]
        %v320 = vld [vmem:[#allocation2 + $0x58] sm:$0xff]
        %v321 = vld [vmem:[#allocation2 + $0x60] sm:$0xff]
        %v322 = vld [vmem:[#allocation2 + $0x68] sm:$0xff]
        %v323 = vld [vmem:[#allocation2 + $0x70] sm:$0xff]
        %v324 = vld [vmem:[#allocation2 + $0x78] sm:$0xff]
        %v325 = vld [vmem:[%s233] sm:$0xf]
        %v326 = vld [vmem:[%s233 + $0x4] sm:$0xf]
        %v327 = vld [vmem:[%s233 + $0x8] sm:$0xf]
        %v328 = vld [vmem:[%s233 + $0xc] sm:$0xf]
        %v329 = vld [vmem:[%s233 + $0x10] sm:$0xf]
        %v330 = vld [vmem:[%s233 + $0x14] sm:$0xf]
        %v331 = vld [vmem:[%s233 + $0x18] sm:$0xf]
        %v332 = vld [vmem:[%s233 + $0x1c] sm:$0xf]
        %v333 = vld [vmem:[%s233 + $0x20] sm:$0xf]
        %v334 = vld [vmem:[%s233 + $0x24] sm:$0xf]
        %v335 = vld [vmem:[%s233 + $0x28] sm:$0xf]
        %v336 = vld [vmem:[%s233 + $0x2c] sm:$0xf]
        %v337 = vld [vmem:[%s233 + $0x30] sm:$0xf]
        %v338 = vld [vmem:[%s233 + $0x34] sm:$0xf]
        %v339 = vld [vmem:[%s233 + $0x38] sm:$0xf]
        %v340 = vld [vmem:[%s233 + $0x3c] sm:$0xf]
        %v357 = vunpack.c.l.b16 %v325
        %v358 = vunpack.c.l.b16 %v326
        %v359 = vunpack.c.l.b16 %v327
        %v360 = vunpack.c.l.b16 %v328
        %v361 = vunpack.c.l.b16 %v329
        %v362 = vunpack.c.l.b16 %v330
        %v363 = vunpack.c.l.b16 %v331
        %v364 = vunpack.c.l.b16 %v332
        %v365 = vunpack.c.l.b16 %v333
        %v366 = vunpack.c.l.b16 %v334
        %v367 = vunpack.c.l.b16 %v335
        %v368 = vunpack.c.l.b16 %v336
        %v369 = vunpack.c.l.b16 %v337
        %v370 = vunpack.c.l.b16 %v338
        %v371 = vunpack.c.l.b16 %v339
        %v372 = vunpack.c.l.b16 %v340
        %v373 = vpack.c.b16 %v358, %v357
        %v374 = vpack.c.b16 %v360, %v359
        %v375 = vpack.c.b16 %v362, %v361
        %v376 = vpack.c.b16 %v364, %v363
        %v377 = vpack.c.b16 %v366, %v365
        %v378 = vpack.c.b16 %v368, %v367
        %v379 = vpack.c.b16 %v370, %v369
        %v380 = vpack.c.b16 %v372, %v371
        %389 = vmatprep.subr.bf16.mxu0 0
        %390 = vmatpush1.bf16.msra.mxu0 %v373
        %391 = vmatprep.subr.bf16.mxu0 0
        %392 = vmatpush1.bf16.msra.mxu0 %v374
        %393 = vmatprep.subr.bf16.mxu0 0
        %394 = vmatpush1.bf16.msra.mxu0 %v375
        %395 = vmatprep.subr.bf16.mxu0 0
        %396 = vmatpush1.bf16.msra.mxu0 %v376
        %397 = vmatprep.subr.bf16.mxu0 0
        %398 = vmatpush1.bf16.msra.mxu0 %v377
        %399 = vmatprep.subr.bf16.mxu0 0
        %400 = vmatpush1.bf16.msra.mxu0 %v378
        %401 = vmatprep.subr.bf16.mxu0 0
        %402 = vmatpush1.bf16.msra.mxu0 %v379
        %403 = vmatprep.subr.bf16.mxu0 0
        %404 = vmatpush1.bf16.msra.mxu0 %v380
        %405 = vmatprep.subr.bf16.mxu0 0
        %406 = vmatpush1.bf16.msra.mxu0 0
        %407 = vmatprep.subr.bf16.mxu0 0
        %408 = vmatpush1.bf16.msra.mxu0 0
        %409 = vmatprep.subr.bf16.mxu0 0
        %410 = vmatpush1.bf16.msra.mxu0 0
        %411 = vmatprep.subr.bf16.mxu0 0
        %412 = vmatpush1.bf16.msra.mxu0 0
        %413 = vmatprep.subr.bf16.mxu0 0
        %414 = vmatpush1.bf16.msra.mxu0 0
        %415 = vmatprep.subr.bf16.mxu0 0
        %416 = vmatpush1.bf16.msra.mxu0 0
        %417 = vmatprep.subr.bf16.mxu0 0
        %418 = vmatpush1.bf16.msra.mxu0 0
        %419 = vmatprep.subr.bf16.mxu0 0
        %420 = vmatpush1.bf16.msra.mxu0 0
        %421 = vmatprep.mubr.bf16.mxu0 0
        %422 = vmatmul.mubr.bf16.gmra.mrb[0].mxu0 %v301
        %v423 = vpop.f32.mrb[0].mxu0
        %v424 = vadd.f32 0.0, %v423
        %v425 = vpop.f32.mrb[0].mxu0
        %v426 = vpop.f32.mrb[0].mxu0
        %v427 = vadd.f32 0.0, %v426
        %v428 = vpop.f32.mrb[0].mxu0
        %429 = vmatprep.mubr.bf16.mxu0 0
        %430 = vmatmul.mubr.bf16.gmra.mrb[0].mxu0 %v302
        %v431 = vpop.f32.mrb[0].mxu0
        %v432 = vadd.f32 0.0, %v431
        %v433 = vpop.f32.mrb[0].mxu0
        %v434 = vpop.f32.mrb[0].mxu0
        %v435 = vadd.f32 0.0, %v434
        %v436 = vpop.f32.mrb[0].mxu0
        %437 = vmatprep.mubr.bf16.mxu0 0
        %438 = vmatmul.mubr.bf16.gmra.mrb[0].mxu0 %v303
        %v439 = vpop.f32.mrb[0].mxu0
        %v440 = vadd.f32 0.0, %v439
        %v441 = vpop.f32.mrb[0].mxu0
        %v442 = vpop.f32.mrb[0].mxu0
        %v443 = vadd.f32 0.0, %v442
        %v444 = vpop.f32.mrb[0].mxu0
        %445 = vmatprep.mubr.bf16.mxu0 0
        %446 = vmatmul.mubr.bf16.gmra.mrb[0].mxu0 %v304
        %v447 = vpop.f32.mrb[0].mxu0
        %v448 = vadd.f32 0.0, %v447
        %v449 = vpop.f32.mrb[0].mxu0
        %v450 = vpop.f32.mrb[0].mxu0
        %v451 = vadd.f32 0.0, %v450
        %v452 = vpop.f32.mrb[0].mxu0
        %453 = vmatprep.mubr.bf16.mxu0 0
        %454 = vmatmul.mubr.bf16.gmra.mrb[0].mxu0 %v305
        %v455 = vpop.f32.mrb[0].mxu0
        %v456 = vadd.f32 0.0, %v455
        %v457 = vpop.f32.mrb[0].mxu0
        %v458 = vpop.f32.mrb[0].mxu0
        %v459 = vadd.f32 0.0, %v458
        %v460 = vpop.f32.mrb[0].mxu0
        %461 = vmatprep.mubr.bf16.mxu0 0
        %462 = vmatmul.mubr.bf16.gmra.mrb[0].mxu0 %v306
        %v463 = vpop.f32.mrb[0].mxu0
        %v464 = vadd.f32 0.0, %v463
        %v465 = vpop.f32.mrb[0].mxu0
        %v466 = vpop.f32.mrb[0].mxu0
        %v467 = vadd.f32 0.0, %v466
        %v468 = vpop.f32.mrb[0].mxu0
        %469 = vmatprep.mubr.bf16.mxu0 0
        %470 = vmatmul.mubr.bf16.gmra.mrb[0].mxu0 %v307
        %v471 = vpop.f32.mrb[0].mxu0
        %v472 = vadd.f32 0.0, %v471
        %v473 = vpop.f32.mrb[0].mxu0
        %v474 = vpop.f32.mrb[0].mxu0
        %v475 = vadd.f32 0.0, %v474
        %v476 = vpop.f32.mrb[0].mxu0
        %477 = vmatprep.mubr.bf16.mxu0 0
        %478 = vmatmul.mubr.bf16.gmra.mrb[0].mxu0 %v308
        %v479 = vpop.f32.mrb[0].mxu0
        %v480 = vadd.f32 0.0, %v479
        %v481 = vpop.f32.mrb[0].mxu0
        %v482 = vpop.f32.mrb[0].mxu0
        %v483 = vadd.f32 0.0, %v482
        %v484 = vpop.f32.mrb[0].mxu0
        %485 = vdwg.mxu0
        %v486 = vadd.f32 %v309, %v424
        %v487 = vadd.f32 %v310, %v427
        %v488 = vadd.f32 %v311, %v432
        %v489 = vadd.f32 %v312, %v435
        %v490 = vadd.f32 %v313, %v440
        %v491 = vadd.f32 %v314, %v443
        %v492 = vadd.f32 %v315, %v448
        %v493 = vadd.f32 %v316, %v451
        %v494 = vadd.f32 %v317, %v456
        %v495 = vadd.f32 %v318, %v459
        %v496 = vadd.f32 %v319, %v464
        %v497 = vadd.f32 %v320, %v467
        %v498 = vadd.f32 %v321, %v472
        %v499 = vadd.f32 %v322, %v475
        %v500 = vadd.f32 %v323, %v480
        %v501 = vadd.f32 %v324, %v483
        %502 = vst [vmem:[#allocation2] sm:$0xff] %v486
        %503 = vst [vmem:[#allocation2 + $0x8] sm:$0xff] %v487
        %504 = vst [vmem:[#allocation2 + $0x10] sm:$0xff] %v488
        %505 = vst [vmem:[#allocation2 + $0x18] sm:$0xff] %v489
        %506 = vst [vmem:[#allocation2 + $0x20] sm:$0xff] %v490
        %507 = vst [vmem:[#allocation2 + $0x28] sm:$0xff] %v491
        %508 = vst [vmem:[#allocation2 + $0x30] sm:$0xff] %v492
        %509 = vst [vmem:[#allocation2 + $0x38] sm:$0xff] %v493
        %510 = vst [vmem:[#allocation2 + $0x40] sm:$0xff] %v494
        %511 = vst [vmem:[#allocation2 + $0x48] sm:$0xff] %v495
        %512 = vst [vmem:[#allocation2 + $0x50] sm:$0xff] %v496
        %513 = vst [vmem:[#allocation2 + $0x58] sm:$0xff] %v497
        %514 = vst [vmem:[#allocation2 + $0x60] sm:$0xff] %v498
        %515 = vst [vmem:[#allocation2 + $0x68] sm:$0xff] %v499
        %516 = vst [vmem:[#allocation2 + $0x70] sm:$0xff] %v500
        %517 = vst [vmem:[#allocation2 + $0x78] sm:$0xff] %v501
        // Predicated region
        $region45: #{tpu_custom_call.1} parent=31 // pred_check
          %p518 = pneg %p265
        $region46: #{tpu_custom_call.1} parent=31 // pred_check_branch
          %520 = sbr.rel (%p518) target = $region48
        $region47: #{tpu_custom_call.1} parent=31 // pred_region
          %v521 = vld [vmem:[#allocation2] sm:$0xff]
          %v522 = vld [vmem:[#allocation2 + $0x8] sm:$0xff]
          %v523 = vld [vmem:[#allocation2 + $0x10] sm:$0xff]
          %v524 = vld [vmem:[#allocation2 + $0x18] sm:$0xff]
          %v525 = vld [vmem:[#allocation2 + $0x20] sm:$0xff]
          %v526 = vld [vmem:[#allocation2 + $0x28] sm:$0xff]
          %v527 = vld [vmem:[#allocation2 + $0x30] sm:$0xff]
          %v528 = vld [vmem:[#allocation2 + $0x38] sm:$0xff]
          %v529 = vld [vmem:[#allocation2 + $0x40] sm:$0xff]
          %v530 = vld [vmem:[#allocation2 + $0x48] sm:$0xff]
          %v531 = vld [vmem:[#allocation2 + $0x50] sm:$0xff]
          %v532 = vld [vmem:[#allocation2 + $0x58] sm:$0xff]
          %v533 = vld [vmem:[#allocation2 + $0x60] sm:$0xff]
          %v534 = vld [vmem:[#allocation2 + $0x68] sm:$0xff]
          %v535 = vld [vmem:[#allocation2 + $0x70] sm:$0xff]
          %v536 = vld [vmem:[#allocation2 + $0x78] sm:$0xff]
          %v537 = vld [vmem:[%s2] sm:$0x1]
          %v539 = vlaneseq
          %v540 = vshrl.u32 %v539, 7
          %v541 = vsub.s32 0, %v540
          %v542 = vrot.slane %v537, %v541
          %v544 = vadd.f32 %v521, %v542
          %v545 = vadd.f32 %v522, %v542
          %v546 = vadd.f32 %v523, %v542
          %v547 = vadd.f32 %v524, %v542
          %v548 = vadd.f32 %v525, %v542
          %v549 = vadd.f32 %v526, %v542
          %v550 = vadd.f32 %v527, %v542
          %v551 = vadd.f32 %v528, %v542
          %v552 = vadd.f32 %v529, %v542
          %v553 = vadd.f32 %v530, %v542
          %v554 = vadd.f32 %v531, %v542
          %v555 = vadd.f32 %v532, %v542
          %v556 = vadd.f32 %v533, %v542
          %v557 = vadd.f32 %v534, %v542
          %v558 = vadd.f32 %v535, %v542
          %v559 = vadd.f32 %v536, %v542
          %v560 = vmax.f32 %v544, 0.0
          %v561 = vmax.f32 %v545, 0.0
          %v562 = vmax.f32 %v546, 0.0
          %v563 = vmax.f32 %v547, 0.0
          %v564 = vmax.f32 %v548, 0.0
          %v565 = vmax.f32 %v549, 0.0
          %v566 = vmax.f32 %v550, 0.0
          %v567 = vmax.f32 %v551, 0.0
          %v568 = vmax.f32 %v552, 0.0
          %v569 = vmax.f32 %v553, 0.0
          %v570 = vmax.f32 %v554, 0.0
          %v571 = vmax.f32 %v555, 0.0
          %v572 = vmax.f32 %v556, 0.0
          %v573 = vmax.f32 %v557, 0.0
          %v574 = vmax.f32 %v558, 0.0
          %v575 = vmax.f32 %v559, 0.0
          %576 = vst [vmem:[%s260] sm:$0xff] %v560
          %577 = vst [vmem:[%s260 + $0x8] sm:$0xff] %v561
          %578 = vst [vmem:[%s260 + $0x10] sm:$0xff] %v562
          %579 = vst [vmem:[%s260 + $0x18] sm:$0xff] %v563
          %580 = vst [vmem:[%s260 + $0x20] sm:$0xff] %v564
          %581 = vst [vmem:[%s260 + $0x28] sm:$0xff] %v565
          %582 = vst [vmem:[%s260 + $0x30] sm:$0xff] %v566
          %583 = vst [vmem:[%s260 + $0x38] sm:$0xff] %v567
          %584 = vst [vmem:[%s260 + $0x40] sm:$0xff] %v568
          %585 = vst [vmem:[%s260 + $0x48] sm:$0xff] %v569
          %586 = vst [vmem:[%s260 + $0x50] sm:$0xff] %v570
          %587 = vst [vmem:[%s260 + $0x58] sm:$0xff] %v571
          %588 = vst [vmem:[%s260 + $0x60] sm:$0xff] %v572
          %589 = vst [vmem:[%s260 + $0x68] sm:$0xff] %v573
          %590 = vst [vmem:[%s260 + $0x70] sm:$0xff] %v574
          %591 = vst [vmem:[%s260 + $0x78] sm:$0xff] %v575
        $region48: #{tpu_custom_call.1} parent=31 // pred_fallthru
          _
        %s592 = sand.u32 %s131, 1
        %s593 = scalar_lea.sflag [#allocation5], %s592
        %s594 = sand.u32 %s131, 1
        %s595 = smul.addr %s594, 128
        %s596 = scalar_lea.vmem [#allocation8], %s595
        // Predicated region
        $region49: #{tpu_custom_call.1} parent=31 // pred_check
          %p597 = pneg %p141
        $region50: #{tpu_custom_call.1} parent=31 // pred_check_branch
          %599 = sbr.rel (%p597) target = $region52
        $region51: #{tpu_custom_call.1} parent=31 // pred_region
          %s600 = smul.u32 16, %s29
          %s602 = ssub.s32 2048, 2048
          %603 = vsyncadd %s593, %s602
          %s604 = smul.addr %s28, 16
          %s605 = sadd.s32 %s600, %s604
          %s606 = smul.addr %s605, 128
          %s607 = scalar_lea.hbm %s3, %s606
          %s608 = sshll.u32 %s596, 4
          %s609 = int_to_ptr.vmem [resolvable:$true] %s608
          %614 = dma.vmem_to_hbm [thread:$0]  %s609, 2048, %s607, %s593, 128, 128, 8
        $region52: #{tpu_custom_call.1} parent=31 // pred_fallthru
          _
      $region32: #{tpu_custom_call.1} parent=5 // pred_fallthru
        _
      %p615 = scmp.le.s32.totalorder 2, %s18
      // Predicated region
      $region53: #{tpu_custom_call.1} parent=5 // pred_check
        %p616 = pneg %p615
      $region54: #{tpu_custom_call.1} parent=5 // pred_check_branch
        %618 = sbr.rel (%p616) target = $region56
      $region55: #{tpu_custom_call.1} parent=5 // pred_region
        %s619 = ssub.s32 %s18, 2
        // Predicated region
        $region57: #{tpu_custom_call.1} parent=55 // pred_check
          %p620 = pneg %p147
        $region58: #{tpu_custom_call.1} parent=55 // pred_check_branch
          %622 = sbr.rel (%p620) target = $region60
        $region59: #{tpu_custom_call.1} parent=55 // pred_region
          %s623 = sand.u32 %s132, 1
          %s624 = scalar_lea.sflag [#allocation5], %s623
          %s625 = sand.u32 %s132, 1
          %s626 = smul.addr %s625, 128
          %s627 = scalar_lea.vmem [#allocation8], %s626
          %628 = dma.done %s624, 2048
        $region60: #{tpu_custom_call.1} parent=55 // pred_fallthru
          _
      $region56: #{tpu_custom_call.1} parent=5 // pred_fallthru
        _
    $region6: #{tpu_custom_call.1} parent=1 // loop_footer
      %s22 = sadd.s32 1, %s18
    $region7: #{tpu_custom_call.1} parent=1 // loop_footer_branch
      %17 = sbr.rel target = $region3
    $region8: #{tpu_custom_call.1} parent=1 // loop_exit
      _
    %629 = vsyncpa [#allocation4], 1
    %s630 = scalar_lea.sflag [#allocation4], 1
    %631 = vsyncpa %s630, 1
    %632 = vsyncpa [#allocation7], 1
    %s633 = scalar_lea.sflag [#allocation7], 1
    %634 = vsyncpa %s633, 1
    %635 = vsyncpa [#allocation5], 1
    %s636 = scalar_lea.sflag [#allocation5], 1
    %637 = vsyncpa %s636, 1

</llo_original>
